<compile_context>
chip_gen: v7x
topology: tpu7x:2x2x1
jax: 0.10.0
libtpu: 0.0.40
codegen_flags: <defaults>
</compile_context>

<pallas_src>
import jax
import jax.numpy as jnp
from jax.experimental import pallas as pl
from jax.experimental.pallas import tpu as pltpu

_LANE = 1024        # lane-dense last dim (multiple of 128)
_BLOCK_ROWS = 1024  # rows per grid step -> 4 MiB f32 per array block


def _scale_kernel(w_ref, x_ref, o_ref):
    # w_ref: (1, 1) f32 conv weight scalar in SMEM
    # x_ref / o_ref: (block_rows, _LANE) VMEM tiles
    w = w_ref[0, 0]
    o_ref[...] = (x_ref[...] * w).astype(o_ref.dtype)


def civilnet_forward(x, conv_weight):
    """x: (N, 1, H, W); conv_weight: (1, 1, 1, 1). Returns conv(x) (stubs are identity)."""
    N, C, H, W = x.shape
    assert C == 1 and conv_weight.shape == (1, 1, 1, 1)
    out_dtype = x.dtype
    w_scalar = conv_weight.reshape(1, 1).astype(jnp.float32)

    total = N * C * H * W
    flat = x.reshape(-1)

    # Flatten to a lane-dense (grid_rows, _LANE) slab, padding the tail.
    n_rows = pl.cdiv(total, _LANE)
    if n_rows <= _BLOCK_ROWS:
        # Single block spanning the full array (full-extent block waives the
        # (8,128) divisibility rule for small shapes).
        block_rows = n_rows
        grid_rows = n_rows
    else:
        block_rows = _BLOCK_ROWS
        grid_rows = pl.cdiv(n_rows, _BLOCK_ROWS) * _BLOCK_ROWS
    padded_total = grid_rows * _LANE
    if padded_total != total:
        flat = jnp.pad(flat, (0, padded_total - total))
    x2d = flat.reshape(grid_rows, _LANE)
    num_blocks = grid_rows // block_rows

    out2d = pl.pallas_call(
        _scale_kernel,
        out_shape=jax.ShapeDtypeStruct((grid_rows, _LANE), out_dtype),
        grid=(num_blocks,),
        in_specs=[
            pl.BlockSpec(memory_space=pltpu.MemorySpace.SMEM),        # weight
            pl.BlockSpec((block_rows, _LANE), lambda i: (i, 0)),      # x slab
        ],
        out_specs=pl.BlockSpec((block_rows, _LANE), lambda i: (i, 0)),
        compiler_params=pltpu.CompilerParams(
            dimension_semantics=("parallel",),
            vmem_limit_bytes=32 * 1024 * 1024,
        ),
    )(w_scalar, x2d)

    return out2d.reshape(-1)[:total].reshape(N, C, H, W)


if __name__ == "__main__":
    key = jax.random.PRNGKey(0)
    k_x, k_w, k_x2 = jax.random.split(key, 3)

    # Conv2d(1, 1, k=1) expects 1 input channel.
    N, C, H, W = 2, 1, 16, 16
    x0 = jax.random.normal(k_x, (N, C, H, W), dtype=jnp.float32)
    conv_weight = jax.random.uniform(
        k_w, (1, 1, 1, 1), dtype=jnp.float32, minval=-1.0, maxval=1.0
    )

    out = civilnet_forward(x0, conv_weight)
    out = jax.block_until_ready(out)
    ref = x0 * conv_weight[0, 0, 0, 0]
    assert out.shape == (N, C, H, W)
    assert jnp.allclose(out, ref, atol=1e-6, rtol=1e-6)

    # Second small case exercising the tail-padding path (total not a
    # multiple of the lane width).
    x1 = jax.random.normal(k_x2, (3, 1, 40, 24), dtype=jnp.float32)
    out1 = jax.block_until_ready(civilnet_forward(x1, conv_weight))
    assert jnp.allclose(out1, x1 * conv_weight[0, 0, 0, 0], atol=1e-6, rtol=1e-6)

    print("KERNEL_OK")
</pallas_src>

<mosaic_0001>
module attributes {stable_mosaic.version = 11 : i64} {
  func.func @_scale_kernel(%arg0: i32, %arg1: memref<1x1xf32, #tpu.memory_space<smem>>, %arg2: memref<1x1024xf32, #tpu.memory_space<vmem>>, %arg3: memref<1x1024xf32, #tpu.memory_space<vmem>>) attributes {dimension_semantics = [#tpu.dimension_semantics<parallel>], iteration_bounds = array<i64: 1>, scalar_prefetch = 0 : i64, scratch_operands = 0 : i64, tpu.core_type = #tpu.core_type<tc>, window_params = [{transform_indices = @transform_0, window_bounds = array<i64: 1, 1>}, {transform_indices = @transform_1, window_bounds = array<i64: 1, 1024>}, {transform_indices = @transform_2, window_bounds = array<i64: 1, 1024>}]} {
    %c0 = arith.constant 0 : index
    %c0_0 = arith.constant 0 : index
    %0 = memref.load %arg1[%c0, %c0_0] : memref<1x1xf32, #tpu.memory_space<smem>>
    %c0_1 = arith.constant 0 : index
    %c0_2 = arith.constant 0 : index
    %1 = vector.load %arg2[%c0_1, %c0_2] : memref<1x1024xf32, #tpu.memory_space<vmem>>, vector<1x1024xf32>
    %2 = vector.broadcast %0 : f32 to vector<1x1024xf32>
    %3 = arith.mulf %1, %2 : vector<1x1024xf32>
    %c0_3 = arith.constant 0 : index
    %c0_4 = arith.constant 0 : index
    %4 = vector.load %arg3[%c0_3, %c0_4] : memref<1x1024xf32, #tpu.memory_space<vmem>>, vector<1x1024xf32>
    tpu.vector_store %arg3[%c0_3, %c0_4], %3 {strides = array<i32>} : memref<1x1024xf32, #tpu.memory_space<vmem>>, vector<1x1024xf32>,
    return
  }
  func.func @transform_0(%arg0: i32) -> (i32, i32) {
    %c0_i32 = arith.constant 0 : i32
    %c0_i32_0 = arith.constant 0 : i32
    %c0_i32_1 = arith.constant 0 : i32
    return %c0_i32, %c0_i32_0 : i32, i32
  }
  func.func @transform_1(%arg0: i32) -> (i32, i32) {
    %c0_i32 = arith.constant 0 : i32
    %c0_i32_0 = arith.constant 0 : i32
    return %arg0, %c0_i32 : i32, i32
  }
  func.func @transform_2(%arg0: i32) -> (i32, i32) {
    %c0_i32 = arith.constant 0 : i32
    %c0_i32_0 = arith.constant 0 : i32
    return %arg0, %c0_i32 : i32, i32
  }
}

</mosaic_0001>

<llo_original>
// kernel: tpu_custom_call.1
$region0: #{tpu_custom_call.1}
  #allocation0 [shape = 'u32[]', space=smem, size = 0x4, offset = 0x4, fixed_abs, tag = 'smem constant byte address 0x4 - core index']
  #allocation1 [shape = 'u32[144,128]{1,0:T(1,128)}', space=vmem, size = 0x12000, scoped, tag = 'internal scratch']
  #allocation2 [shape = 'f32[1,1]{1,0:T(1,128)S(6)}', space=smem, size = 0x200, scoped, tag = 'scoped memory for tpu_custom_call.1']
  %s0 = inlined_call_operand.<no memory space> [shape: f32[1,1], index: 0, kind: input, shape index: {}]
  %s1 = inlined_call_operand.hbm [shape: f32[1,1024], index: 1, kind: input, shape index: {}]
  %s2 = inlined_call_operand.hbm [shape: f32[1,1024], index: 2, kind: output, shape index: {}]
  %s3 = sld [smem:[#allocation0]]
  $region22: #{tpu_custom_call.1} parent=0
    _
  %s5 = ssub.s32 1, %s3
  %s6 = scalar_select 0, %s5, %s3
  %7 = sst [smem:[#allocation2]] %s0
  $region1: #{tpu_custom_call.1} parent=0
    #allocation3 [shape = 'u8[4096]{0}', space=vmem, size = 0x1000, scoped, tag = 'input window, operand 1, single buffered']
    #allocation4 [shape = 's32[1]{0}', space=sflag, size = 0x4, scoped, tag = 'scoped memory for tpu_custom_call.1']
    #allocation5 [shape = 's32[1]{0}', space=sflag, size = 0x4, scoped, tag = 'scoped memory for tpu_custom_call.1']
    #allocation6 [shape = 'u8[4096]{0}', space=vmem, size = 0x1000, scoped, tag = 'output window, operand 0, single buffered']
    %8 = vsyncpa [#allocation4], 0
    %9 = vsyncpa [#allocation5], 0
    // Predicated region
    $region2: #{tpu_custom_call.1} parent=1 // pred_check
      _
    $region3: #{tpu_custom_call.1} parent=1 // pred_check_branch
      %11 = sbr.rel (0) target = $region5
    $region4: #{tpu_custom_call.1} parent=1 // pred_region
      _
    $region5: #{tpu_custom_call.1} parent=1 // pred_fallthru
      _
    // Predicated region
    $region6: #{tpu_custom_call.1} parent=1 // pred_check
      _
    $region7: #{tpu_custom_call.1} parent=1 // pred_check_branch
      %13 = sbr.rel (0) target = $region9
    $region8: #{tpu_custom_call.1} parent=1 // pred_region
      %s15 = ssub.s32 128, 128
      %16 = vsyncadd [#allocation4], %s15
      %s18 = sshll.u32 [#allocation3], 4
      %s19 = int_to_ptr.vmem [resolvable:$true] %s18
      %21 = dma.hbm_to_vmem [thread:$0]  %s1, 128, %s19, [#allocation4]
    $region9: #{tpu_custom_call.1} parent=1 // pred_fallthru
      _
    // Predicated region
    $region10: #{tpu_custom_call.1} parent=1 // pred_check
      _
    $region11: #{tpu_custom_call.1} parent=1 // pred_check_branch
      %23 = sbr.rel (0) target = $region13
    $region12: #{tpu_custom_call.1} parent=1 // pred_region
      %24 = dma.done [#allocation4], 128
    $region13: #{tpu_custom_call.1} parent=1 // pred_fallthru
      _
    %s25 = sld [smem:[#allocation2]]
    %v26 = vld [vmem:[#allocation3] sm:$0xff]
    %v27 = vstv %s25
    %v28 = vmul.f32 %v26, %v27
    %29 = vst [vmem:[#allocation6] sm:$0xff] %v28
    // Predicated region
    $region14: #{tpu_custom_call.1} parent=1 // pred_check
      _
    $region15: #{tpu_custom_call.1} parent=1 // pred_check_branch
      %31 = sbr.rel (0) target = $region17
    $region16: #{tpu_custom_call.1} parent=1 // pred_region
      %s33 = ssub.s32 128, 128
      %34 = vsyncadd [#allocation5], %s33
      %s36 = sshll.u32 [#allocation6], 4
      %s37 = int_to_ptr.vmem [resolvable:$true] %s36
      %39 = dma.vmem_to_hbm [thread:$0]  %s37, 128, %s2, [#allocation5]
    $region17: #{tpu_custom_call.1} parent=1 // pred_fallthru
      _
    // Predicated region
    $region18: #{tpu_custom_call.1} parent=1 // pred_check
      _
    $region19: #{tpu_custom_call.1} parent=1 // pred_check_branch
      %41 = sbr.rel (0) target = $region21
    $region20: #{tpu_custom_call.1} parent=1 // pred_region
      %42 = dma.done [#allocation5], 128
    $region21: #{tpu_custom_call.1} parent=1 // pred_fallthru
      _
    %43 = vsyncpa [#allocation4], 1
    %44 = vsyncpa [#allocation5], 1

</llo_original>
